<compile_context>
chip_gen: v7x
topology: tpu7x:2x2x1
jax: 0.10.0
libtpu: 0.0.40
codegen_flags: <defaults>
</compile_context>

<pallas_src>
import functools

import jax
import jax.numpy as jnp
from jax.experimental import pallas as pl
from jax.experimental.pallas import tpu as pltpu


def _round_up(x, m):
    return ((x + m - 1) // m) * m


def _pow_static(x, gamma):
    """x ** gamma with a *static* Python exponent.

    Integer gamma -> repeated VALU multiplies (cheap, no NaN risk).
    Non-integer gamma -> jnp.power (EUP log+exp), base already clamped >= 0.
    """
    g = float(gamma)
    if g.is_integer() and 0.0 <= g <= 16.0:
        p = int(g)
        if p == 0:
            return jnp.ones_like(x)
        result = x
        for _ in range(p - 1):
            result = result * x
        return result
    return jnp.power(x, g)


def _focal_loss_kernel(logits_ref, targets_ref, psum_ref, *, alpha, gamma,
                       ignore_index, n_rows):
    # logits_ref : (TM, C) native dtype in VMEM (last tile may contain garbage
    #              rows past n_rows -> masked below by global row index)
    # targets_ref: (TM, 1) int32 in VMEM
    # psum_ref   : (8, 128) f32 in VMEM; per-tile partial sum broadcast into it
    logits = logits_ref[...].astype(jnp.float32)              # (TM, C)
    targets = targets_ref[...]                                # (TM, 1) int32
    tm, c = logits.shape

    # --- global-row mask (replaces wrapper-side padding) ---
    row0 = pl.program_id(0) * tm
    row_ids = row0 + jax.lax.broadcasted_iota(jnp.int32, (tm, 1), 0)
    in_bounds = row_ids < n_rows                              # (TM, 1) bool

    # --- numerically stable log-softmax / cross-entropy per row ---
    row_max = jnp.max(logits, axis=-1, keepdims=True)                 # (TM, 1)
    shifted = logits - row_max                                        # (TM, C)
    sum_exp = jnp.sum(jnp.exp(shifted), axis=-1, keepdims=True)       # (TM, 1)
    lse = jnp.log(sum_exp)                                            # (TM, 1)

    class_ids = jax.lax.broadcasted_iota(jnp.int32, (tm, c), 1)       # (TM, C)
    onehot = class_ids == targets                                     # (TM, C)
    tgt_shifted = jnp.sum(jnp.where(onehot, shifted, 0.0),
                          axis=-1, keepdims=True)                     # (TM, 1)

    ce = lse - tgt_shifted                                            # (TM, 1)

    # ignore_index rows and out-of-bounds (garbage) rows contribute exactly 0;
    # clamp tiny negative rounding so exp(-ce) <= 1 and the pow base stays >= 0.
    valid = jnp.logical_and(in_bounds, targets != ignore_index)
    ce = jnp.where(valid, jnp.maximum(ce, 0.0), 0.0)

    # --- focal modulation ---
    pt = jnp.exp(-ce)
    one_minus_pt = jnp.maximum(1.0 - pt, 0.0)
    focal = alpha * _pow_static(one_minus_pt, gamma) * ce             # (TM, 1)

    # Per-tile partial sum, written as one lane-dense (8, 128) block
    # (single unmasked vector store; exact tile sum lives in every element).
    tile_sum = jnp.sum(focal, axis=0, keepdims=True)                  # (1, 1)
    psum_ref[...] = jnp.broadcast_to(tile_sum, psum_ref.shape).astype(
        psum_ref.dtype)


def focal_loss(logits, targets, *, alpha=1.0, gamma=2.0, ignore_index=-100):
    """logits: (N, C) float32/bfloat16, targets: (N,) int. Returns scalar f32."""
    n, c = logits.shape
    itemsize = jnp.dtype(logits.dtype).itemsize

    # --- generation-aware VMEM budgets ---
    try:
        info = pltpu.get_tpu_info()
        vmem_cap = int(getattr(info, "vmem_capacity_bytes", 64 * 1024 * 1024))
    except Exception:  # pragma: no cover - conservative fallback
        vmem_cap = 64 * 1024 * 1024
    if vmem_cap >= 128 * 1024 * 1024:            # v5e / v6e (128 MiB physical)
        resident_budget = 48 * 1024 * 1024
        vmem_limit = 64 * 1024 * 1024
    else:                                        # v7x (64 MiB per TensorCore)
        resident_budget = 36 * 1024 * 1024
        vmem_limit = 48 * 1024 * 1024

    # Per-row resident bytes: 2x double-buffered native-dtype input row,
    # ~4 f32 (TM, C) temporaries (cast / shifted / exp / onehot-where),
    # plus a few f32 per-row columns and the int32 target.
    per_row_bytes = 2 * c * itemsize + 16 * c + 64
    tm = resident_budget // max(1, per_row_bytes)
    tm = max(8, min(32768, (tm // 8) * 8))
    # Keep >= ~4 tiles when possible so v7x megacore can shard the parallel axis.
    tm = min(tm, max(8, _round_up(pl.cdiv(n, 4), 8)))
    # Never exceed the (rounded-up) row count.
    tm = min(tm, _round_up(n, 8))
    num_tiles = pl.cdiv(n, tm)

    targets2d = targets.astype(jnp.int32).reshape(n, 1)

    kernel = functools.partial(
        _focal_loss_kernel,
        alpha=float(alpha),
        gamma=float(gamma),
        ignore_index=int(ignore_index),
        n_rows=int(n),
    )

    partials = pl.pallas_call(
        kernel,
        out_shape=jax.ShapeDtypeStruct((num_tiles * 8, 128), jnp.float32),
        grid=(num_tiles,),
        in_specs=[
            pl.BlockSpec((tm, c), lambda i: (i, 0)),   # logits tile (unpadded)
            pl.BlockSpec((tm, 1), lambda i: (i, 0)),   # targets tile
        ],
        out_specs=pl.BlockSpec((8, 128), lambda i: (i, 0)),
        compiler_params=pltpu.CompilerParams(
            dimension_semantics=("parallel",),
            vmem_limit_bytes=vmem_limit,
        ),
        cost_estimate=pl.CostEstimate(
            flops=6 * n * c,
            transcendentals=n * (c + 2),
            bytes_accessed=n * c * itemsize + 4 * n + num_tiles * 8 * 128 * 4,
        ),
    )(logits, targets2d)

    # One exact tile-sum per tile (element [8*i, 0]); final mean divides by the
    # ORIGINAL N (PyTorch .mean() includes ignore_index rows in the denominator).
    tile_sums = partials[0::8, 0]
    return jnp.sum(tile_sums) / jnp.float32(n)


def _focal_loss_ref(logits, targets, alpha=1.0, gamma=2.0, ignore_index=-100):
    # pure-JAX reference mirroring the PyTorch module
    logits = logits.astype(jnp.float32)
    lse = jax.nn.logsumexp(logits, axis=-1)
    safe_t = jnp.where(targets == ignore_index, 0, targets)
    tgt = jnp.take_along_axis(logits, safe_t[:, None], axis=-1)[:, 0]
    ce = lse - tgt
    ce = jnp.where(targets == ignore_index, 0.0, ce)
    pt = jnp.exp(-ce)
    return jnp.mean(alpha * (1.0 - pt) ** gamma * ce)


if __name__ == "__main__":
    key = jax.random.PRNGKey(0)
    k1, k2 = jax.random.split(key)

    # Small shape consistent with a classification head: 16 samples, 32 classes.
    N, C = 16, 32
    logits = jax.random.normal(k1, (N, C), dtype=jnp.float32) * 2.0
    targets = jax.random.randint(k2, (N,), 0, C, dtype=jnp.int32)
    # a couple of ignored rows to exercise ignore_index handling
    targets = targets.at[3].set(-100).at[7].set(-100)

    out = focal_loss(logits, targets, alpha=1.0, gamma=2.0, ignore_index=-100)
    out = jax.block_until_ready(out)
    ref = _focal_loss_ref(logits, targets)
    assert jnp.allclose(out, ref, rtol=2e-4, atol=1e-6), (out, ref)

    # A shape whose last row tile is partial (N % TM != 0) to exercise the
    # in-kernel global-row masking (no wrapper-side padding anymore).
    N2, C2 = 1000, 256
    k3, k4 = jax.random.split(k1)
    logits2 = jax.random.normal(k3, (N2, C2), dtype=jnp.float32)
    targets2 = jax.random.randint(k4, (N2,), 0, C2, dtype=jnp.int32)
    targets2 = targets2.at[5].set(-100)
    out2 = jax.block_until_ready(focal_loss(logits2, targets2))
    ref2 = _focal_loss_ref(logits2, targets2)
    assert jnp.allclose(out2, ref2, rtol=2e-4, atol=1e-6), (out2, ref2)

    print("KERNEL_OK")
</pallas_src>

<mosaic_0001>
module attributes {stable_mosaic.version = 11 : i64} {
  func.func @_focal_loss_kernel(%arg0: i32, %arg1: memref<8x32xf32, #tpu.memory_space<vmem>>, %arg2: memref<8x1xi32, #tpu.memory_space<vmem>>, %arg3: memref<8x128xf32, #tpu.memory_space<vmem>>) attributes {dimension_semantics = [#tpu.dimension_semantics<parallel>], iteration_bounds = array<i64: 2>, scalar_prefetch = 0 : i64, scratch_operands = 0 : i64, tpu.core_type = #tpu.core_type<tc>, window_params = [{transform_indices = @transform_0, window_bounds = array<i64: 8, 32>}, {transform_indices = @transform_1, window_bounds = array<i64: 8, 1>}, {transform_indices = @transform_2, window_bounds = array<i64: 8, 128>}]} {
    %c0 = arith.constant 0 : index
    %c0_0 = arith.constant 0 : index
    %0 = vector.load %arg1[%c0, %c0_0] : memref<8x32xf32, #tpu.memory_space<vmem>>, vector<8x32xf32>
    %c0_1 = arith.constant 0 : index
    %c0_2 = arith.constant 0 : index
    %1 = vector.load %arg2[%c0_1, %c0_2] : memref<8x1xi32, #tpu.memory_space<vmem>>, vector<8x1xi32>
    %c8_i32 = arith.constant 8 : i32
    %2 = arith.muli %arg0, %c8_i32 : i32
    %3 = tpu.iota {dimensions = array<i32: 0>} : vector<8x1xi32>
    %4 = vector.broadcast %2 : i32 to vector<8x1xi32>
    %5 = arith.addi %4, %3 : vector<8x1xi32>
    %c16_i32 = arith.constant 16 : i32
    %6 = vector.broadcast %c16_i32 : i32 to vector<8x1xi32>
    %7 = arith.cmpi slt, %5, %6 : vector<8x1xi32>
    %cst = arith.constant dense<0xFF800000> : vector<8xf32>
    %8 = vector.multi_reduction <maximumf>, %0, %cst [1] : vector<8x32xf32> to vector<8xf32>
    %9 = vector.shape_cast %8 : vector<8xf32> to vector<8x1xf32>
    %10 = vector.broadcast %9 : vector<8x1xf32> to vector<8x32xf32>
    %11 = arith.subf %0, %10 : vector<8x32xf32>
    %12 = math.exp %11 : vector<8x32xf32>
    %cst_3 = arith.constant dense<0.000000e+00> : vector<8xf32>
    %13 = vector.multi_reduction <add>, %12, %cst_3 [1] : vector<8x32xf32> to vector<8xf32>
    %14 = vector.shape_cast %13 : vector<8xf32> to vector<8x1xf32>
    %15 = math.log %14 : vector<8x1xf32>
    %16 = tpu.iota {dimensions = array<i32: 1>} : vector<8x32xi32>
    %17 = vector.broadcast %1 : vector<8x1xi32> to vector<8x32xi32>
    %18 = arith.cmpi eq, %16, %17 : vector<8x32xi32>
    %cst_4 = arith.constant 0.000000e+00 : f32
    %19 = vector.broadcast %cst_4 : f32 to vector<8x32xf32>
    %20 = arith.select %18, %11, %19 : vector<8x32xi1>, vector<8x32xf32>
    %cst_5 = arith.constant dense<0.000000e+00> : vector<8xf32>
    %21 = vector.multi_reduction <add>, %20, %cst_5 [1] : vector<8x32xf32> to vector<8xf32>
    %22 = vector.shape_cast %21 : vector<8xf32> to vector<8x1xf32>
    %23 = arith.subf %15, %22 : vector<8x1xf32>
    %c-100_i32 = arith.constant -100 : i32
    %24 = vector.broadcast %c-100_i32 : i32 to vector<8x1xi32>
    %25 = arith.cmpi ne, %1, %24 : vector<8x1xi32>
    %26 = arith.andi %7, %25 : vector<8x1xi1>
    %cst_6 = arith.constant 0.000000e+00 : f32
    %27 = vector.broadcast %cst_6 : f32 to vector<8x1xf32>
    %28 = arith.maximumf %23, %27 : vector<8x1xf32>
    %cst_7 = arith.constant 0.000000e+00 : f32
    %29 = vector.broadcast %cst_7 : f32 to vector<8x1xf32>
    %30 = arith.select %26, %28, %29 : vector<8x1xi1>, vector<8x1xf32>
    %cst_8 = arith.constant 0.000000e+00 : f32
    %31 = vector.broadcast %cst_8 : f32 to vector<8x1xf32>
    %32 = arith.subf %31, %30 : vector<8x1xf32>
    %33 = math.exp %32 : vector<8x1xf32>
    %cst_9 = arith.constant 1.000000e+00 : f32
    %34 = vector.broadcast %cst_9 : f32 to vector<8x1xf32>
    %35 = arith.subf %34, %33 : vector<8x1xf32>
    %cst_10 = arith.constant 0.000000e+00 : f32
    %36 = vector.broadcast %cst_10 : f32 to vector<8x1xf32>
    %37 = arith.maximumf %35, %36 : vector<8x1xf32>
    %38 = arith.mulf %37, %37 : vector<8x1xf32>
    %cst_11 = arith.constant 1.000000e+00 : f32
    %39 = vector.broadcast %cst_11 : f32 to vector<8x1xf32>
    %40 = arith.mulf %39, %38 : vector<8x1xf32>
    %41 = arith.mulf %40, %30 : vector<8x1xf32>
    %cst_12 = arith.constant dense<0.000000e+00> : vector<1xf32>
    %42 = vector.multi_reduction <add>, %41, %cst_12 [0] : vector<8x1xf32> to vector<1xf32>
    %43 = vector.shape_cast %42 : vector<1xf32> to vector<1x1xf32>
    %44 = vector.shape_cast %43 : vector<1x1xf32> to vector<1x1xf32>
    %45 = vector.broadcast %44 : vector<1x1xf32> to vector<8x128xf32>
    %c0_13 = arith.constant 0 : index
    %c0_14 = arith.constant 0 : index
    %46 = vector.load %arg3[%c0_13, %c0_14] : memref<8x128xf32, #tpu.memory_space<vmem>>, vector<8x128xf32>
    tpu.vector_store %arg3[%c0_13, %c0_14], %45 {strides = array<i32>} : memref<8x128xf32, #tpu.memory_space<vmem>>, vector<8x128xf32>,
    return
  }
  func.func @transform_0(%arg0: i32) -> (i32, i32) {
    %c0_i32 = arith.constant 0 : i32
    %c0_i32_0 = arith.constant 0 : i32
    return %arg0, %c0_i32 : i32, i32
  }
  func.func @transform_1(%arg0: i32) -> (i32, i32) {
    %c0_i32 = arith.constant 0 : i32
    %c0_i32_0 = arith.constant 0 : i32
    return %arg0, %c0_i32 : i32, i32
  }
  func.func @transform_2(%arg0: i32) -> (i32, i32) {
    %c0_i32 = arith.constant 0 : i32
    %c0_i32_0 = arith.constant 0 : i32
    return %arg0, %c0_i32 : i32, i32
  }
}

</mosaic_0001>

<llo_original>
// kernel: tpu_custom_call.1
$region0: #{tpu_custom_call.1}
  #allocation0 [shape = 'u32[]', space=smem, size = 0x4, offset = 0x4, fixed_abs, tag = 'smem constant byte address 0x4 - core index']
  #allocation1 [shape = 'u32[144,128]{1,0:T(1,128)}', space=vmem, size = 0x12000, scoped, tag = 'internal scratch']
  %s0 = inlined_call_operand.vmem [shape: f32[16,32], index: 0, kind: input, shape index: {}]
  %s1 = inlined_call_operand.vmem [shape: s32[16,1], index: 1, kind: input, shape index: {}]
  %s2 = inlined_call_operand.hbm [shape: f32[16,128], index: 2, kind: output, shape index: {}]
  %s3 = sld [smem:[#allocation0]]
  $region41: #{tpu_custom_call.1} parent=0
    _
  %s5 = ssub.s32 1, %s3
  %s6 = scalar_select 0, %s5, %s3
  $region1: #{tpu_custom_call.1} parent=0
    #allocation2 [shape = 'u8[8192]{0}', space=vmem, size = 0x2000, scoped, tag = 'output window, operand 0']
    #allocation3 [shape = 's32[2]{0}', space=sflag, size = 0x8, scoped, tag = 'scoped memory for tpu_custom_call.1']
    %7 = vsyncpa [#allocation3], 0
    %s8 = scalar_lea.sflag [#allocation3], 1
    %9 = vsyncpa %s8, 0
    loop: start=0, step=1, limit=4
    $region2: #{tpu_custom_call.1} parent=1 // loop_pre_header
      _
    $region3: #{tpu_custom_call.1} parent=1 // loop_header
      %s11 = sphi 0, %s15
      %p12 = scmp.ge.s32.totalorder %s11, 4
      %s21 = sphi 0, %s23
      %s24 = sphi 0, %s21
      %s25 = sphi 0, %s24
      %s41 = sphi 0, %s25
      %s47 = sphi 0, %s49
      %s50 = sphi 0, %s47
      %s51 = sphi 0, %s50
      %s67 = sphi 0, %s51
      %s73 = sphi 0, %s75
      %s76 = sphi 0, %s73
      %s77 = sphi 0, %s76
      %s93 = sphi 0, %s77
    $region4: #{tpu_custom_call.1} parent=1 // loop_header_branch
      %14 = sbr.rel (%p12) target = $region8
    $region5: #{tpu_custom_call.1} parent=1 // loop_body
      %s16 = ssub.s32 %s11, 1
      %s17 = ssub.s32 %s11, 2
      %s18 = sadd.s32 %s11, 1
      %s19 = ssub.s32 %s11, %s18
      %p20 = scmp.eq.s32.totalorder %s19, 0
      %s22 = sadd.s32 %s21, 1
      %s23 = scalar_select %p20, %s21, %s22
      %p26 = pneg %p20
      %p27 = scmp.eq.s32.totalorder %s11, 1
      %p28 = por %p26, %p27
      %p29 = scmp.ne.s32.totalorder %s21, %s24
      %p30 = scmp.eq.s32.totalorder %s11, 0
      %p31 = por %p29, %p30
      %p32 = scmp.ne.s32.totalorder %s21, %s24
      %p33 = scmp.eq.s32.totalorder %s16, 1
      %p34 = por %p32, %p33
      %p35 = scmp.ne.s32.totalorder %s24, %s25
      %p36 = scmp.eq.s32.totalorder %s16, 0
      %p37 = por %p35, %p36
      %p38 = scmp.ne.s32.totalorder %s24, %s25
      %p39 = scmp.eq.s32.totalorder %s17, 1
      %p40 = por %p38, %p39
      %p42 = scmp.ne.s32.totalorder %s25, %s41
      %p43 = scmp.eq.s32.totalorder %s17, 0
      %p44 = por %p42, %p43
      %s45 = ssub.s32 %s11, %s18
      %p46 = scmp.eq.s32.totalorder %s45, 0
      %s48 = sadd.s32 %s47, 1
      %s49 = scalar_select %p46, %s47, %s48
      %p52 = pneg %p46
      %p53 = scmp.eq.s32.totalorder %s11, 1
      %p54 = por %p52, %p53
      %p55 = scmp.ne.s32.totalorder %s47, %s50
      %p56 = scmp.eq.s32.totalorder %s11, 0
      %p57 = por %p55, %p56
      %p58 = scmp.ne.s32.totalorder %s47, %s50
      %p59 = scmp.eq.s32.totalorder %s16, 1
      %p60 = por %p58, %p59
      %p61 = scmp.ne.s32.totalorder %s50, %s51
      %p62 = scmp.eq.s32.totalorder %s16, 0
      %p63 = por %p61, %p62
      %p64 = scmp.ne.s32.totalorder %s50, %s51
      %p65 = scmp.eq.s32.totalorder %s17, 1
      %p66 = por %p64, %p65
      %p68 = scmp.ne.s32.totalorder %s51, %s67
      %p69 = scmp.eq.s32.totalorder %s17, 0
      %p70 = por %p68, %p69
      %s71 = ssub.s32 %s11, %s18
      %p72 = scmp.eq.s32.totalorder %s71, 0
      %s74 = sadd.s32 %s73, 1
      %s75 = scalar_select %p72, %s73, %s74
      %p78 = pneg %p72
      %p79 = scmp.eq.s32.totalorder %s11, 1
      %p80 = por %p78, %p79
      %p81 = scmp.ne.s32.totalorder %s73, %s76
      %p82 = scmp.eq.s32.totalorder %s11, 0
      %p83 = por %p81, %p82
      %p84 = scmp.ne.s32.totalorder %s73, %s76
      %p85 = scmp.eq.s32.totalorder %s16, 1
      %p86 = por %p84, %p85
      %p87 = scmp.ne.s32.totalorder %s76, %s77
      %p88 = scmp.eq.s32.totalorder %s16, 0
      %p89 = por %p87, %p88
      %p90 = scmp.ne.s32.totalorder %s76, %s77
      %p91 = scmp.eq.s32.totalorder %s17, 1
      %p92 = por %p90, %p91
      %p94 = scmp.ne.s32.totalorder %s77, %s93
      %p95 = scmp.eq.s32.totalorder %s17, 0
      %p96 = por %p94, %p95
      %p97 = scmp.le.s32.totalorder 1, %s11
      %p98 = scmp.lt.s32.totalorder %s11, 3
      %p99 = pnand %p97, %p98
      %p100 = pneg %p99
      // Predicated region
      $region9: #{tpu_custom_call.1} parent=5 // pred_check
        _
      $region10: #{tpu_custom_call.1} parent=5 // pred_check_branch
        %102 = sbr.rel (%p99) target = $region12
      $region11: #{tpu_custom_call.1} parent=5 // pred_region
        %s103 = ssub.s32 %s11, 1
      $region12: #{tpu_custom_call.1} parent=5 // pred_fallthru
        _
      %p104 = scmp.lt.s32.totalorder %s11, 2
      // Predicated region
      $region13: #{tpu_custom_call.1} parent=5 // pred_check
        %p105 = pneg %p104
      $region14: #{tpu_custom_call.1} parent=5 // pred_check_branch
        %107 = sbr.rel (%p105) target = $region16
      $region15: #{tpu_custom_call.1} parent=5 // pred_region
        // Predicated region
        $region17: #{tpu_custom_call.1} parent=15 // pred_check
          %p108 = pneg %p31
        $region18: #{tpu_custom_call.1} parent=15 // pred_check_branch
          %110 = sbr.rel (%p108) target = $region20
        $region19: #{tpu_custom_call.1} parent=15 // pred_region
          %p111 = scmp.lt.s32.totalorder %s11, 1
          %s112 = scalar_select %p111, %s11, 1
          %s113 = smul.addr %s112, 8
          %s114 = scalar_lea.vmem %s0, %s113
        $region20: #{tpu_custom_call.1} parent=15 // pred_fallthru
          _
        // Predicated region
        $region21: #{tpu_custom_call.1} parent=15 // pred_check
          %p115 = pneg %p57
        $region22: #{tpu_custom_call.1} parent=15 // pred_check_branch
          %117 = sbr.rel (%p115) target = $region24
        $region23: #{tpu_custom_call.1} parent=15 // pred_region
          %p118 = scmp.lt.s32.totalorder %s11, 1
          %s119 = scalar_select %p118, %s11, 1
          %s120 = smul.addr %s119, 8
          %s121 = scalar_lea.vmem %s1, %s120
        $region24: #{tpu_custom_call.1} parent=15 // pred_fallthru
          _
      $region16: #{tpu_custom_call.1} parent=5 // pred_fallthru
        _
      %p122 = scmp.le.s32.totalorder 1, %s11
      %p123 = scmp.lt.s32.totalorder %s11, 3
      %p124 = pnand %p122, %p123
      %p125 = pneg %p124
      // Predicated region
      $region25: #{tpu_custom_call.1} parent=5 // pred_check
        _
      $region26: #{tpu_custom_call.1} parent=5 // pred_check_branch
        %127 = sbr.rel (%p124) target = $region28
      $region27: #{tpu_custom_call.1} parent=5 // pred_region
        %s128 = ssub.s32 %s11, 1
        %p129 = scmp.lt.s32.totalorder %s16, 1
        %s130 = scalar_select %p129, %s16, 1
        %s131 = smul.addr %s130, 8
        %s132 = scalar_lea.vmem %s0, %s131
        %p133 = pneg %p37
        %p134 = pneg %p34
        %p135 = scmp.lt.s32.totalorder %s16, 1
        %s136 = scalar_select %p135, %s16, 1
        %s137 = smul.addr %s136, 8
        %s138 = scalar_lea.vmem %s1, %s137
        %p139 = pneg %p63
        %p140 = pneg %p60
        %p141 = pneg %p89
        %p142 = pneg %p86
        %s143 = sand.u32 %s76, 1
        %s144 = scalar_lea.sflag [#allocation3], %s143
        %s145 = sand.u32 %s76, 1
        %s146 = smul.addr %s145, 8
        %s147 = scalar_lea.vmem [#allocation2], %s146
        %p148 = scmp.lt.s32.totalorder %s16, 1
        %s149 = scalar_select %p148, %s16, 1
        %s150 = smul.addr %s149, 8
        %s151 = scalar_lea.vmem %s0, %s150
        %p152 = scmp.lt.s32.totalorder %s16, 1
        %s153 = scalar_select %p152, %s16, 1
        %s154 = smul.addr %s153, 8
        %s155 = scalar_lea.vmem %s1, %s154
        %v156 = vld [vmem:[%s151] sm:$0xff]
        %v157 = vld [vmem:[%s155] sm:$0xff]
        %s158 = smul.u32 %s16, 8
        %v159 = vlaneseq
        %v160 = vshrl.u32 %v159, 7
        %v161 = vstv %s158
        %v162 = vadd.s32 %v161, %v160
        %vm163 = vcmp.lt.s32.totalorder %v162, 16
        %vm164 = vcmask 261120
        %v165 = vsel %vm164, %v156, -inf
        %166 = vmax.xlane.f32.xlu0 %v165
        %v167 = vpop.xlane.xlu0 %166
        %v168 = vsub.f32 %v156, %v167
        %v169 = vmul.f32 %v168, 1.442695
        %v170 = vpow.pop %v169
        %v171 = vsel %vm164, %v170, 0.0
        %172 = vadd.xlane.f32.xlu0 %v171
        %v173 = vpop.xlane.xlu0 %172
        %v174 = vlog2.pop %v173
        %v175 = vmul.f32 %v174, 0.6931472
        %v176 = vlaneseq
        %v177 = vand.u32 %v176, 127
        %178 = vset.pattern.permute.xlu0 0
        %179 = vperm.xlu0 %178, %v157
        %v180 = vpop.permute.xlu0 %179
        %vm181 = vcmp.eq.s32.totalorder %v177, %v180
        %v182 = vsel %vm181, %v168, 0.0
        %v183 = vsel %vm164, %v182, 0.0
        %184 = vadd.xlane.f32.xlu0 %v183
        %v185 = vpop.xlane.xlu0 %184
        %v186 = vsub.f32 %v175, %v185
        %vm187 = vcmp.ne.s32.totalorder %v157, 4294967196
        %vm188 = vmand %vm163, %vm187
        %v189 = vmax.f32 %v186, 0.0
        %v190 = vsel %vm188, %v189, 0.0
        %v191 = vsub.f32 0.0, %v190
        %v192 = vmul.f32 %v191, 1.442695
        %v193 = vpow.pop %v192
        %v194 = vsub.f32 1.0, %v193
        %v195 = vmax.f32 %v194, 0.0
        %v196 = vmul.f32 %v195, %v195
        %v197 = vmul.f32 %v196, %v190
        %vm198 = vcmask 7168
        %v199 = vsel %vm198, %v197, 0.0
        %v200 = vrot.slane %v199, 4
        %v201 = vadd.f32 %v199, %v200
        %v202 = vrot.slane %v201, 2
        %v203 = vadd.f32 %v201, %v202
        %v204 = vrot.slane %v203, 1
        %v205 = vadd.f32 %v203, %v204
        %207 = vset.pattern.permute.xlu0 0
        %208 = vperm.xlu0 %207, %v205
        %v209 = vpop.permute.xlu0 %208
        %211 = vst [vmem:[%s147] sm:$0xff] %v209
        %s212 = sand.u32 %s76, 1
        %s213 = scalar_lea.sflag [#allocation3], %s212
        %s214 = sand.u32 %s76, 1
        %s215 = smul.addr %s214, 8
        %s216 = scalar_lea.vmem [#allocation2], %s215
        // Predicated region
        $region29: #{tpu_custom_call.1} parent=27 // pred_check
          %p217 = pneg %p86
        $region30: #{tpu_custom_call.1} parent=27 // pred_check_branch
          %219 = sbr.rel (%p217) target = $region32
        $region31: #{tpu_custom_call.1} parent=27 // pred_region
          %s221 = ssub.s32 128, 128
          %222 = vsyncadd %s213, %s221
          %s223 = smul.addr %s16, 128
          %s224 = scalar_lea.hbm %s2, %s223
          %s226 = sshll.u32 %s216, 4
          %s227 = int_to_ptr.vmem [resolvable:$true] %s226
          %229 = dma.vmem_to_hbm [thread:$0]  %s227, 128, %s224, %s213
        $region32: #{tpu_custom_call.1} parent=27 // pred_fallthru
          _
      $region28: #{tpu_custom_call.1} parent=5 // pred_fallthru
        _
      %p230 = scmp.le.s32.totalorder 2, %s11
      // Predicated region
      $region33: #{tpu_custom_call.1} parent=5 // pred_check
        %p231 = pneg %p230
      $region34: #{tpu_custom_call.1} parent=5 // pred_check_branch
        %233 = sbr.rel (%p231) target = $region36
      $region35: #{tpu_custom_call.1} parent=5 // pred_region
        %s234 = ssub.s32 %s11, 2
        // Predicated region
        $region37: #{tpu_custom_call.1} parent=35 // pred_check
          %p235 = pneg %p92
        $region38: #{tpu_custom_call.1} parent=35 // pred_check_branch
          %237 = sbr.rel (%p235) target = $region40
        $region39: #{tpu_custom_call.1} parent=35 // pred_region
          %s238 = sand.u32 %s77, 1
          %s239 = scalar_lea.sflag [#allocation3], %s238
          %s240 = sand.u32 %s77, 1
          %s241 = smul.addr %s240, 8
          %s242 = scalar_lea.vmem [#allocation2], %s241
          %243 = dma.done %s239, 128
        $region40: #{tpu_custom_call.1} parent=35 // pred_fallthru
          _
      $region36: #{tpu_custom_call.1} parent=5 // pred_fallthru
        _
    $region6: #{tpu_custom_call.1} parent=1 // loop_footer
      %s15 = sadd.s32 1, %s11
    $region7: #{tpu_custom_call.1} parent=1 // loop_footer_branch
      %10 = sbr.rel target = $region3
    $region8: #{tpu_custom_call.1} parent=1 // loop_exit
      _
    %244 = vsyncpa [#allocation3], 1
    %s245 = scalar_lea.sflag [#allocation3], 1
    %246 = vsyncpa %s245, 1

</llo_original>
